<compile_context>
chip_gen: v5e
topology: v5e:2x2
jax: 0.10.0
libtpu: 0.0.40
codegen_flags: <defaults>
</compile_context>

<pallas_src>
import jax
import jax.numpy as jnp
from jax import lax
from jax.experimental import pallas as pl
from jax.experimental.pallas import tpu as pltpu


_VMEM_LIMIT_BYTES = 32 * 1024 * 1024   # safe on v5e/v6e (128 MiB phys) and v7x (64 MiB phys)
_X_BLOCK_BYTES = 4 * 1024 * 1024       # target per-buffer x footprint (Pallas double-buffers)


def _cdiv(a: int, b: int) -> int:
    return -(-a // b)


def _round_up(n: int, m: int) -> int:
    return ((n + m - 1) // m) * m


# --------------------------------------------------------------------------------------
# Path 1: small F (F < 128, 128 % F == 0, B*F % 128 == 0) -- lane-dense flat formulation.
# --------------------------------------------------------------------------------------
def _flat_kernel(xf_ref, p_ref, b_ref, y_ref):
    # xf_ref: (tile_r, 128) lane-dense slab of row-major-flattened x (streamed)
    # p_ref : (128, S)      weight-pattern matrix, same block every step -> resident
    # b_ref : (1, 1)        SMEM scalar bias
    # y_ref : (tile_r, S)   compact per-sample outputs (sample index = row*S + col)
    acc = jnp.dot(xf_ref[...], p_ref[...], preferred_element_type=jnp.float32)
    y_ref[...] = (acc + b_ref[0, 0]).astype(y_ref.dtype)


def _linear_small_f(x, weight, bias):
    B, F = x.shape
    S = 128 // F                    # samples per 128-lane row
    R = B // S                      # number of flat rows (B*F % 128 == 0 guaranteed)
    xf = x.reshape(R, 128)          # free: same contiguous bytes, no HBM copy

    # P[s*F + f, s] = w[f]  ->  (xf @ P)[r, s] = sum_f x[r*S + s, f] * w[f]
    w = weight.reshape(-1).astype(jnp.float32)
    P = (jnp.eye(S, dtype=jnp.float32)[:, None, :] * w[None, :, None]).reshape(128, S)
    b_smem = bias.astype(jnp.float32).reshape(1, 1)

    # Tile rows: multi-MiB blocks to amortize ~0.35us/step, multiple of 8, and >= 2 grid
    # steps when there is enough work (v7x megacore).
    max_rows = max(8, (_X_BLOCK_BYTES // (128 * 4)) // 8 * 8)
    if R <= 16:
        tile_r = R                                   # single exact block
    elif R <= 2 * max_rows:
        tile_r = min(max_rows, _round_up(_cdiv(R, 2), 8))
    else:
        tile_r = max_rows
    nb = _cdiv(R, tile_r)

    y = pl.pallas_call(
        _flat_kernel,
        out_shape=jax.ShapeDtypeStruct((nb * tile_r, S), x.dtype),
        grid=(nb,),
        in_specs=[
            pl.BlockSpec((tile_r, 128), lambda i: (i, 0)),   # streamed, full-lane blocks
            pl.BlockSpec((128, S), lambda i: (0, 0)),        # resident weight pattern
            pl.BlockSpec(memory_space=pltpu.MemorySpace.SMEM),
        ],
        out_specs=pl.BlockSpec((tile_r, S), lambda i: (i, 0)),
        compiler_params=pltpu.CompilerParams(
            dimension_semantics=("parallel",),
            vmem_limit_bytes=_VMEM_LIMIT_BYTES,
        ),
    )(xf, P, b_smem)

    # Rows beyond R (clamped boundary block) are garbage and are dropped by [:B].
    return y.reshape(-1)[:B].reshape(B, 1)


# --------------------------------------------------------------------------------------
# Path 2: general row-dot kernel, K-tiled for large F (also the small-B / ragged fallback).
# --------------------------------------------------------------------------------------
def _rowdot_kernel(x_ref, w_ref, b_ref, y_ref, acc_ref):
    # x_ref : (tile_b, tile_k)  batch x feature tile (streamed)
    # w_ref : (1, tile_k)       weight tile
    # b_ref : (1, 1)            SMEM scalar bias
    # y_ref : (1, tile_b)       lane-dense output slab (resident across k)
    # acc_ref: (1, tile_b) f32  VMEM accumulator
    k = pl.program_id(1)

    @pl.when(k == 0)
    def _():
        acc_ref[...] = jnp.zeros_like(acc_ref)

    # Contract the feature dim of both operands: (1, tk) . (tb, tk) -> (1, tb).
    # No materialized transpose; result is already lane-dense; f32 MXU accumulation.
    acc_ref[...] += lax.dot_general(
        w_ref[...], x_ref[...],
        dimension_numbers=(((1,), (1,)), ((), ())),
        preferred_element_type=jnp.float32,
    )

    @pl.when(k == pl.num_programs(1) - 1)
    def _():
        y_ref[...] = (acc_ref[...] + b_ref[0, 0]).astype(y_ref.dtype)


def _pick_tile_k(F: int) -> int:
    if F <= 1024:
        return F
    for tk in (2048, 1024, 512, 256, 128):
        if F % tk == 0:
            return tk
    # TODO(synk): odd large F keeps the K axis untiled; would need a bigger
    # vmem_limit_bytes / smaller batch tile (or zero-padded K) in that regime.
    return F


def _linear_general(x, weight, bias):
    B, F = x.shape
    tile_k = _pick_tile_k(F)
    nk = _cdiv(F, tile_k)           # exact by construction when nk > 1 (no ragged K!)

    if B <= 128:
        tile_b = B                  # exact block (handles B not multiple of 8, no padding)
    else:
        row_bytes = max(tile_k, 128) * 4                       # lane-padded VMEM row
        max_tile = max(128, (_X_BLOCK_BYTES // row_bytes) // 128 * 128)
        tile_b = min(max_tile, _round_up(B, 128))
        # >= 2 batch tiles when possible so "parallel" can shard across v7x's 2 TCs.
        tile_b = min(tile_b, max(128, _round_up(_cdiv(B, 2), 128)))
    nb = _cdiv(B, tile_b)

    b_smem = bias.astype(jnp.float32).reshape(1, 1)

    y = pl.pallas_call(
        _rowdot_kernel,
        out_shape=jax.ShapeDtypeStruct((1, nb * tile_b), x.dtype),
        grid=(nb, nk),              # reduction (K) axis last
        in_specs=[
            pl.BlockSpec((tile_b, tile_k), lambda i, k: (i, k)),
            pl.BlockSpec((1, tile_k), lambda i, k: (0, k)),
            pl.BlockSpec(memory_space=pltpu.MemorySpace.SMEM),
        ],
        out_specs=pl.BlockSpec((1, tile_b), lambda i, k: (0, i)),
        scratch_shapes=[pltpu.VMEM((1, tile_b), jnp.float32)],
        compiler_params=pltpu.CompilerParams(
            dimension_semantics=("parallel", "arbitrary"),
            vmem_limit_bytes=_VMEM_LIMIT_BYTES,
        ),
    )(x, weight, b_smem)

    # Columns beyond B (clamped boundary batch block) are garbage, dropped by [:B].
    return y.reshape(-1)[:B].reshape(B, 1)


def linear_net_forward(x, weight, bias):
    """Pallas equivalent of LinearNet.forward: y = x @ weight.T + bias -> (B, 1)."""
    B, F = x.shape
    assert weight.shape == (1, F)
    assert bias.shape == (1,)
    if F < 128 and 128 % F == 0 and (B * F) % 128 == 0:
        return _linear_small_f(x, weight, bias)
    return _linear_general(x, weight, bias)


if __name__ == "__main__":
    key = jax.random.PRNGKey(0)
    kw, kb, k1, k2, k3, k4, k5 = jax.random.split(key, 7)

    n_features = 2  # ch03 linear regression uses 2 features
    weight = jax.random.normal(kw, (1, n_features), dtype=jnp.float32) * 0.01
    bias = jax.random.normal(kb, (1,), dtype=jnp.float32) * 0.01

    def check(x, w, b, atol=1e-5, rtol=1e-5):
        y = jax.block_until_ready(linear_net_forward(x, w, b))
        y_ref = x @ w.T + b
        assert y.shape == (x.shape[0], 1), y.shape
        assert jnp.allclose(y, y_ref, atol=atol, rtol=rtol), float(jnp.abs(y - y_ref).max())

    # 1) small-F lane-dense path, single exact block (B*F = 512 -> 4 flat rows)
    check(jax.random.normal(k1, (256, n_features), dtype=jnp.float32), weight, bias)

    # 2) tiny ragged batch -> general path with exact (B, F) block, no padding copies
    check(jax.random.normal(k2, (10, n_features), dtype=jnp.float32), weight, bias)

    # 3) general path, multi-tile batch grid with clamped (ragged) last block
    check(jax.random.normal(k3, (300, n_features), dtype=jnp.float32), weight, bias)

    # 4) small-F lane-dense path with a clamped (ragged) last flat-row block (R = 65)
    check(jax.random.normal(k4, (4160, n_features), dtype=jnp.float32), weight, bias)

    # 5) large-F K-tiled accumulator path (F = 4096 -> two K steps, pl.when init/finalize)
    wF = jax.random.normal(kw, (1, 4096), dtype=jnp.float32) * 0.01
    check(jax.random.normal(k5, (16, 4096), dtype=jnp.float32), wF, bias, atol=1e-4, rtol=1e-4)

    print("KERNEL_OK")
</pallas_src>

<mosaic_0001>
module attributes {stable_mosaic.version = 11 : i64} {
  func.func @_flat_kernel(%arg0: i32, %arg1: memref<4x128xf32, #tpu.memory_space<vmem>>, %arg2: memref<128x64xf32, #tpu.memory_space<vmem>>, %arg3: memref<1x1xf32, #tpu.memory_space<smem>>, %arg4: memref<4x64xf32, #tpu.memory_space<vmem>>) attributes {dimension_semantics = [#tpu.dimension_semantics<parallel>], iteration_bounds = array<i64: 1>, scalar_prefetch = 0 : i64, scratch_operands = 0 : i64, tpu.core_type = #tpu.core_type<tc>, window_params = [{transform_indices = @transform_0, window_bounds = array<i64: 4, 128>}, {pipeline_mode = #tpu.pipeline_mode<synchronous>, transform_indices = @transform_1, window_bounds = array<i64: 128, 64>}, {transform_indices = @transform_2, window_bounds = array<i64: 1, 1>}, {transform_indices = @transform_3, window_bounds = array<i64: 4, 64>}]} {
    %c0 = arith.constant 0 : index
    %c0_0 = arith.constant 0 : index
    %0 = vector.load %arg1[%c0, %c0_0] : memref<4x128xf32, #tpu.memory_space<vmem>>, vector<4x128xf32>
    %c0_1 = arith.constant 0 : index
    %c0_2 = arith.constant 0 : index
    %1 = vector.load %arg2[%c0_1, %c0_2] : memref<128x64xf32, #tpu.memory_space<vmem>>, vector<128x64xf32>
    %cst = arith.constant dense<0.000000e+00> : vector<4x64xf32>
    %2 = tpu.matmul %0, %1, %cst {dimension_numbers = #tpu.dot_dimension_numbers<[1], [0], [0], [1], [0, 0, 1, 1], [], []>} : vector<4x128xf32>, vector<128x64xf32>, vector<4x64xf32> -> vector<4x64xf32>
    %c0_3 = arith.constant 0 : index
    %c0_4 = arith.constant 0 : index
    %3 = memref.load %arg3[%c0_3, %c0_4] : memref<1x1xf32, #tpu.memory_space<smem>>
    %4 = vector.broadcast %3 : f32 to vector<4x64xf32>
    %5 = arith.addf %2, %4 : vector<4x64xf32>
    %c0_5 = arith.constant 0 : index
    %c0_6 = arith.constant 0 : index
    %6 = vector.load %arg4[%c0_5, %c0_6] : memref<4x64xf32, #tpu.memory_space<vmem>>, vector<4x64xf32>
    tpu.vector_store %arg4[%c0_5, %c0_6], %5 {strides = array<i32>} : memref<4x64xf32, #tpu.memory_space<vmem>>, vector<4x64xf32>,
    return
  }
  func.func @transform_0(%arg0: i32) -> (i32, i32) {
    %c0_i32 = arith.constant 0 : i32
    %c0_i32_0 = arith.constant 0 : i32
    return %arg0, %c0_i32 : i32, i32
  }
  func.func @transform_1(%arg0: i32) -> (i32, i32) {
    %c0_i32 = arith.constant 0 : i32
    %c0_i32_0 = arith.constant 0 : i32
    %c0_i32_1 = arith.constant 0 : i32
    return %c0_i32, %c0_i32_0 : i32, i32
  }
  func.func @transform_2(%arg0: i32) -> (i32, i32) {
    %c0_i32 = arith.constant 0 : i32
    %c0_i32_0 = arith.constant 0 : i32
    %c0_i32_1 = arith.constant 0 : i32
    return %c0_i32, %c0_i32_0 : i32, i32
  }
  func.func @transform_3(%arg0: i32) -> (i32, i32) {
    %c0_i32 = arith.constant 0 : i32
    %c0_i32_0 = arith.constant 0 : i32
    return %arg0, %c0_i32 : i32, i32
  }
}

</mosaic_0001>

<llo_original>
// kernel: tpu_custom_call.1
$region0: #{tpu_custom_call.1}
  #allocation0 [shape = 'u32[]', space=smem, size = 0x4, offset = 0x4, fixed_abs, tag = 'smem constant byte address 0x4 - core index']
  #allocation1 [shape = 'u32[72,128]{1,0:T(1,128)}', space=vmem, size = 0x9000, scoped, tag = 'internal scratch']
  #allocation2 [shape = 'f32[1,1]{1,0:T(1,128)S(6)}', space=smem, size = 0x200, scoped, tag = 'scoped memory for tpu_custom_call.1']
  %s0 = inlined_call_operand.vmem [shape: f32[4,128], index: 0, kind: input, shape index: {}]
  %s1 = inlined_call_operand.vmem [shape: f32[128,64], index: 1, kind: input, shape index: {}]
  %s2 = inlined_call_operand.<no memory space> [shape: f32[1,1], index: 2, kind: input, shape index: {}]
  %s3 = inlined_call_operand.hbm [shape: f32[4,64], index: 3, kind: output, shape index: {}]
  %s4 = sld [smem:[#allocation0]]
  $region22: #{tpu_custom_call.1} parent=0
    _
  %s6 = ssub.s32 1, %s4
  %s7 = scalar_select 0, %s6, %s4
  %8 = sst [smem:[#allocation2]] %s2
  $region1: #{tpu_custom_call.1} parent=0
    #allocation3 [shape = 'u8[2048]{0}', space=vmem, size = 0x800, scoped, tag = 'output window, operand 0, single buffered']
    #allocation4 [shape = 's32[1]{0}', space=sflag, size = 0x4, scoped, tag = 'scoped memory for tpu_custom_call.1']
    %9 = vsyncpa [#allocation4], 0
    // Predicated region
    $region2: #{tpu_custom_call.1} parent=1 // pred_check
      _
    $region3: #{tpu_custom_call.1} parent=1 // pred_check_branch
      %11 = sbr.rel (0) target = $region5
    $region4: #{tpu_custom_call.1} parent=1 // pred_region
      _
    $region5: #{tpu_custom_call.1} parent=1 // pred_fallthru
      _
    // Predicated region
    $region6: #{tpu_custom_call.1} parent=1 // pred_check
      _
    $region7: #{tpu_custom_call.1} parent=1 // pred_check_branch
      %13 = sbr.rel (0) target = $region9
    $region8: #{tpu_custom_call.1} parent=1 // pred_region
      _
    $region9: #{tpu_custom_call.1} parent=1 // pred_fallthru
      _
    // Predicated region
    $region10: #{tpu_custom_call.1} parent=1 // pred_check
      _
    $region11: #{tpu_custom_call.1} parent=1 // pred_check_branch
      %15 = sbr.rel (0) target = $region13
    $region12: #{tpu_custom_call.1} parent=1 // pred_region
      _
    $region13: #{tpu_custom_call.1} parent=1 // pred_fallthru
      _
    %v16 = vld [vmem:[%s0] sm:$0xf]
    %v17 = vld [vmem:[%s1] sm:$0xff]
    %v18 = vld [vmem:[%s1 + $0x8] sm:$0xff]
    %v19 = vld [vmem:[%s1 + $0x10] sm:$0xff]
    %v20 = vld [vmem:[%s1 + $0x18] sm:$0xff]
    %v21 = vld [vmem:[%s1 + $0x20] sm:$0xff]
    %v22 = vld [vmem:[%s1 + $0x28] sm:$0xff]
    %v23 = vld [vmem:[%s1 + $0x30] sm:$0xff]
    %v24 = vld [vmem:[%s1 + $0x38] sm:$0xff]
    %v25 = vld [vmem:[%s1 + $0x40] sm:$0xff]
    %v26 = vld [vmem:[%s1 + $0x48] sm:$0xff]
    %v27 = vld [vmem:[%s1 + $0x50] sm:$0xff]
    %v28 = vld [vmem:[%s1 + $0x58] sm:$0xff]
    %v29 = vld [vmem:[%s1 + $0x60] sm:$0xff]
    %v30 = vld [vmem:[%s1 + $0x68] sm:$0xff]
    %v31 = vld [vmem:[%s1 + $0x70] sm:$0xff]
    %v32 = vld [vmem:[%s1 + $0x78] sm:$0xff]
    %s33 = sld [smem:[#allocation2]]
    %v34 = vstv %s33
    %35 = vmatpush.msra.mxu0 %v32
    %36 = vmatpush.msra.mxu0 %v31
    %37 = vmatpush.msra.mxu0 %v30
    %38 = vmatpush.msra.mxu0 %v29
    %39 = vmatpush.msra.mxu0 %v28
    %40 = vmatpush.msra.mxu0 %v27
    %41 = vmatpush.msra.mxu0 %v26
    %42 = vmatpush.msra.mxu0 %v25
    %43 = vmatpush.msra.mxu0 %v24
    %44 = vmatpush.msra.mxu0 %v23
    %45 = vmatpush.msra.mxu0 %v22
    %46 = vmatpush.msra.mxu0 %v21
    %47 = vmatpush.msra.mxu0 %v20
    %48 = vmatpush.msra.mxu0 %v19
    %49 = vmatpush.msra.mxu0 %v18
    %50 = vmatpush.msra.mxu0 %v17
    %51 = vmatmul.f32.gmra.mxu0 %v16
    %v52 = vpop.f32.mrf.mxu0
    %v53 = vadd.f32 %v34, %v52
    %54 = vdwg.mxu0
    %vm55 = vcmask 519168
    %56 = vst.msk [vmem:[#allocation3] sm:$0xf] %vm55, %v53
    // Predicated region
    $region14: #{tpu_custom_call.1} parent=1 // pred_check
      _
    $region15: #{tpu_custom_call.1} parent=1 // pred_check_branch
      %58 = sbr.rel (0) target = $region17
    $region16: #{tpu_custom_call.1} parent=1 // pred_region
      %60 = vsyncadd [#allocation4], 0
      %s62 = sshll.u32 [#allocation3], 4
      %s63 = int_to_ptr.vmem [resolvable:$true] %s62
      %s64 = sshll.u32 %s3, 4
      %s65 = int_to_ptr.hbm [resolvable:$true] %s64
      %67 = dma.vmem_to_hbm [thread:$0]  %s63, 64, %s65, [#allocation4]
    $region17: #{tpu_custom_call.1} parent=1 // pred_fallthru
      _
    // Predicated region
    $region18: #{tpu_custom_call.1} parent=1 // pred_check
      _
    $region19: #{tpu_custom_call.1} parent=1 // pred_check_branch
      %69 = sbr.rel (0) target = $region21
    $region20: #{tpu_custom_call.1} parent=1 // pred_region
      %71 = dma.done [#allocation4], 64
    $region21: #{tpu_custom_call.1} parent=1 // pred_fallthru
      _
    %72 = vsyncpa [#allocation4], 1

</llo_original>
